<compile_context>
chip_gen: v7x
topology: tpu7x:2x2x1
jax: 0.10.0
libtpu: 0.0.40
codegen_flags: <defaults>
</compile_context>

<pallas_src>
import numpy as np
import jax
import jax.numpy as jnp
from jax import lax
from jax.experimental import pallas as pl
from jax.experimental.pallas import tpu as pltpu


def _make_embbag_sum_kernel(bags_per_tile, max_len, emb_dim):
    """Kernel over grid (num_bag_tiles,).  Scalar-prefetched args:
       lengths_ref: (num_bags_padded,) int32 in SMEM  (actual bag lengths)
       rows_ref:    (num_bags_padded*max_len,) int32 in SMEM (merged row ids)
       w_ref:       (n_rows, emb_dim) merged table, resident in VMEM
       out_ref:     (bags_per_tile, emb_dim) output tile."""

    def kernel(lengths_ref, rows_ref, w_ref, out_ref):
        tile = pl.program_id(0)
        base = tile * bags_per_tile
        for b in range(bags_per_tile):          # static unroll over bags in tile
            bag = base + b
            n = lengths_ref[bag]                # actual bag length (SMEM scalar)
            row_base = bag * max_len

            def body(j, acc):
                r = rows_ref[row_base + j]      # merged row id
                return acc + w_ref[pl.ds(r, 1), :].astype(jnp.float32)

            acc = lax.fori_loop(
                0, n, body, jnp.zeros((1, emb_dim), jnp.float32))
            out_ref[pl.ds(b, 1), :] = acc.astype(out_ref.dtype)

    return kernel


def merged_embeddingbag_sum_pallas(weight, rows_padded, lengths, *, bags_per_tile):
    """weight: (n_rows, D) merged table.
    rows_padded: (num_bags_padded, max_len) int32 merged row ids (padding slots
                 unused — loop is bounded by `lengths`).
    lengths: (num_bags_padded,) int32 actual bag lengths (0 for padded bags).
    Returns (num_bags_padded, D) SUM-pooled bags."""
    n_rows, d = weight.shape
    num_bags_p, max_len = rows_padded.shape
    assert num_bags_p % bags_per_tile == 0
    grid = (num_bags_p // bags_per_tile,)

    kernel = _make_embbag_sum_kernel(bags_per_tile, max_len, d)

    # --- VMEM residency budget (size to v7x's 64 MiB, not v5e/v6e's 128) ---
    itemsize = np.dtype(weight.dtype).itemsize
    weight_bytes = n_rows * d * itemsize
    try:
        vmem_cap = int(pltpu.get_tpu_info().vmem_capacity_bytes)
    except Exception:
        vmem_cap = 64 * 1024 * 1024            # conservative v7x floor
    budget = (vmem_cap * 3) // 4
    # the pipeline may double-buffer the constant-index weight block -> 2x
    assert 2 * weight_bytes <= budget, (
        "merged table too large for VMEM residency on this chip")
    # TODO(synk): HBM-resident table + manual deep-buffered DMA row gather (P4)
    # fallback for merged tables that exceed the VMEM budget.

    out_tile_bytes = bags_per_tile * d * itemsize
    vmem_limit = int(min(
        max(2 * weight_bytes + 4 * out_tile_bytes + (4 << 20), 32 << 20),
        vmem_cap))

    return pl.pallas_call(
        kernel,
        out_shape=jax.ShapeDtypeStruct((num_bags_p, d), weight.dtype),
        grid_spec=pltpu.PrefetchScalarGridSpec(
            num_scalar_prefetch=2,
            grid=grid,
            # full-array block with constant index -> table DMA'd once, resident
            in_specs=[pl.BlockSpec((n_rows, d), lambda i, lens, rws: (0, 0))],
            out_specs=pl.BlockSpec((bags_per_tile, d),
                                   lambda i, lens, rws: (i, 0)),
        ),
        compiler_params=pltpu.CompilerParams(
            dimension_semantics=("parallel",),    # bags independent; v7x 2-TC
            vmem_limit_bytes=vmem_limit),
    )(lengths, rows_padded.reshape(-1), weight)


class DistMergeEmbeddingBagWithAdaGradPallas:
    """Single-rank (world_size=1) instantiation of DistMergeEmbeddingBagWithAdaGrad."""

    def __init__(self, table_weights, include_last_offset=True, lr=0.01, eps=1e-10):
        self.n_tables = len(table_weights)
        self.embedding_dim = int(table_weights[0].shape[1])
        self.include_last_offset = include_last_offset
        self._rank = 0
        self._size = 1
        # row_offset[t+1] = row_offset[t] + num_rows(table t)
        self._row_offset = np.zeros(self.n_tables + 1, dtype=np.int64)
        for i, w in enumerate(table_weights):
            self._row_offset[i + 1] = self._row_offset[i] + w.shape[0]
        weight_allin1 = jnp.concatenate(
            list(table_weights), axis=0)[self._rank::self._size, :]
        assert weight_allin1.shape[0] < 2**31, "merged row ids must fit int32"
        self.weight = weight_allin1
        # AdaGrad state: forward-pass-unused (backward-only in the PyTorch module)
        self.lr = lr
        self.eps = eps
        self.hessian = jnp.zeros_like(weight_allin1)
        # f32 -> 8 bags/tile (full sublanes); bf16 -> 16 (packed sublanes)
        self.bags_per_tile = 8 if np.dtype(weight_allin1.dtype).itemsize >= 4 else 16
        # TODO(synk): multi-rank sparse all_to_all (dist.all_to_all) would need
        # pltpu.make_async_remote_copy across a device mesh; not emulated here.

    def forward(self, indices, offsets):
        global_bs = int(offsets[0].shape[0])
        if self.include_last_offset:
            global_bs -= 1
        local_bs = global_bs // self._size
        T, D = self.n_tables, self.embedding_dim

        # ---- host glue: ragged bags -> padded row table (vectorized numpy) ----
        idx_np = [np.asarray(ix, dtype=np.int64) for ix in indices]
        ofs_np = [np.asarray(of, dtype=np.int64) for of in offsets]

        starts, ends = [], []
        for t in range(T):
            st = ofs_np[t][:global_bs]
            if self.include_last_offset:
                en = ofs_np[t][1:global_bs + 1]
            else:
                en = np.concatenate(
                    [ofs_np[t][1:global_bs],
                     np.array([idx_np[t].shape[0]], dtype=np.int64)])
            starts.append(st)
            ends.append(en)
        lens = np.stack([e - s for s, e in zip(starts, ends)], axis=1)  # (B, T)
        lens = lens.astype(np.int32)

        # bucket max_len to a power of two -> stable kernel shape, no recompiles
        raw_max = int(max(1, lens.max()))
        max_len = max(4, 1 << (raw_max - 1).bit_length())

        num_bags = global_bs * T
        tb = self.bags_per_tile
        num_bags_p = ((num_bags + tb - 1) // tb) * tb

        rows = np.zeros((global_bs, T, max_len), dtype=np.int32)
        j = np.arange(max_len)[None, :]
        for t in range(T):
            pos = starts[t][:, None] + j                 # (B, max_len)
            valid = j < lens[:, t][:, None]
            pos = np.where(valid, pos, 0)
            vals = idx_np[t][pos] + self._row_offset[t]
            rows[:, t, :] = np.where(valid, vals, 0).astype(np.int32)

        rows_p = np.zeros((num_bags_p, max_len), dtype=np.int32)
        rows_p[:num_bags] = rows.reshape(num_bags, max_len)
        lens_p = np.zeros((num_bags_p,), dtype=np.int32)
        lens_p[:num_bags] = lens.reshape(num_bags)
        # TODO(synk): for very large batch*tables*max_len the flat row table can
        # exceed SMEM capacity; chunk the grid over bag tiles in that case.

        # ---- hot path: Pallas SUM-pool kernel over the VMEM-resident table ----
        out_flat = merged_embeddingbag_sum_pallas(
            self.weight, jnp.asarray(rows_p), jnp.asarray(lens_p),
            bags_per_tile=tb)
        return out_flat[:num_bags].reshape(local_bs, T, D)


def _reference_forward(table_weights, indices, offsets, include_last_offset):
    T = len(table_weights)
    B = int(offsets[0].shape[0]) - (1 if include_last_offset else 0)
    D = int(table_weights[0].shape[1])
    out = np.zeros((B, T, D), dtype=np.float32)
    for t in range(T):
        w = np.asarray(table_weights[t])
        idx = np.asarray(indices[t])
        ofs = np.asarray(offsets[t])
        for b in range(B):
            start = int(ofs[b])
            end = int(ofs[b + 1]) if (include_last_offset or b + 1 < B) else idx.shape[0]
            if end > start:
                out[b, t, :] = w[idx[start:end]].sum(axis=0)
    return out


if __name__ == "__main__":
    emb_dim = 128               # lane-aligned embedding dim
    table_rows = [20, 30, 50]   # 3 tables
    batch = 4
    max_bag = 6
    include_last_offset = True

    key = jax.random.PRNGKey(0)
    wkeys = jax.random.split(key, len(table_rows))
    table_weights = [
        jax.random.normal(wkeys[i], (n, emb_dim), dtype=jnp.float32)
        for i, n in enumerate(table_rows)
    ]

    # deterministic ragged indices/offsets (EmbeddingBag 1-D indices + offsets)
    rng = np.random.RandomState(0)
    indices, offsets = [], []
    for t, n in enumerate(table_rows):
        lens = rng.randint(1, max_bag + 1, size=batch)
        ofs = np.zeros(batch + 1, dtype=np.int64)
        ofs[1:] = np.cumsum(lens)
        idx = rng.randint(0, n, size=int(ofs[-1])).astype(np.int64)
        indices.append(jnp.asarray(idx))
        offsets.append(jnp.asarray(ofs))

    mod = DistMergeEmbeddingBagWithAdaGradPallas(
        table_weights, include_last_offset=include_last_offset)
    out = mod.forward(indices, offsets)
    out = jax.block_until_ready(out)

    ref = _reference_forward(table_weights, indices, offsets, include_last_offset)
    assert out.shape == (batch, len(table_rows), emb_dim), out.shape
    np.testing.assert_allclose(np.asarray(out), ref, rtol=1e-5, atol=1e-5)
    print("KERNEL_OK")
</pallas_src>

<mosaic_0001>
module attributes {stable_mosaic.version = 11 : i64} {
  func.func @kernel(%arg0: i32, %arg1: memref<16xi32, #tpu.memory_space<smem>>, %arg2: memref<128xi32, #tpu.memory_space<smem>>, %arg3: memref<100x128xf32, #tpu.memory_space<vmem>>, %arg4: memref<8x128xf32, #tpu.memory_space<vmem>>) attributes {dimension_semantics = [#tpu.dimension_semantics<parallel>], iteration_bounds = array<i64: 2>, scalar_prefetch = 2 : i64, scratch_operands = 0 : i64, tpu.core_type = #tpu.core_type<tc>, window_params = [{pipeline_mode = #tpu.pipeline_mode<synchronous>, transform_indices = @transform_0, window_bounds = array<i64: 100, 128>}, {transform_indices = @transform_1, window_bounds = array<i64: 8, 128>}]} {
    %c8_i32 = arith.constant 8 : i32
    %0 = arith.muli %arg0, %c8_i32 : i32
    %c0_i32 = arith.constant 0 : i32
    %1 = arith.addi %0, %c0_i32 : i32
    %2 = arith.index_cast %1 : i32 to index
    %3 = memref.load %arg1[%2] : memref<16xi32, #tpu.memory_space<smem>>
    %c8_i32_0 = arith.constant 8 : i32
    %4 = arith.muli %1, %c8_i32_0 : i32
    %cst = arith.constant 0.000000e+00 : f32
    %5 = vector.broadcast %cst : f32 to vector<1x128xf32>
    %c0_i32_1 = arith.constant 0 : i32
    %6 = arith.subi %3, %c0_i32_1 : i32
    %7 = arith.addi %c0_i32_1, %6 : i32
    %c1_i32 = arith.constant 1 : i32
    %8 = scf.for %arg5 = %c0_i32_1 to %7 step %c1_i32 iter_args(%arg6 = %5) -> (vector<1x128xf32>)  : i32 {
      %73 = arith.addi %4, %arg5 : i32
      %74 = arith.index_cast %73 : i32 to index
      %75 = memref.load %arg2[%74] : memref<128xi32, #tpu.memory_space<smem>>
      %76 = arith.index_cast %75 : i32 to index
      %c0_39 = arith.constant 0 : index
      %77 = vector.load %arg3[%76, %c0_39] : memref<100x128xf32, #tpu.memory_space<vmem>>, vector<1x128xf32>
      %78 = arith.addf %arg6, %77 : vector<1x128xf32>
      scf.yield %78 : vector<1x128xf32>
    }
    %c0 = arith.constant 0 : index
    %c0_2 = arith.constant 0 : index
    %9 = vector.load %arg4[%c0, %c0_2] : memref<8x128xf32, #tpu.memory_space<vmem>>, vector<1x128xf32>
    tpu.vector_store %arg4[%c0, %c0_2], %8 {strides = array<i32>} : memref<8x128xf32, #tpu.memory_space<vmem>>, vector<1x128xf32>,
    %c1_i32_3 = arith.constant 1 : i32
    %10 = arith.addi %0, %c1_i32_3 : i32
    %11 = arith.index_cast %10 : i32 to index
    %12 = memref.load %arg1[%11] : memref<16xi32, #tpu.memory_space<smem>>
    %c8_i32_4 = arith.constant 8 : i32
    %13 = arith.muli %10, %c8_i32_4 : i32
    %cst_5 = arith.constant 0.000000e+00 : f32
    %14 = vector.broadcast %cst_5 : f32 to vector<1x128xf32>
    %c0_i32_6 = arith.constant 0 : i32
    %15 = arith.subi %12, %c0_i32_6 : i32
    %16 = arith.addi %c0_i32_6, %15 : i32
    %c1_i32_7 = arith.constant 1 : i32
    %17 = scf.for %arg5 = %c0_i32_6 to %16 step %c1_i32_7 iter_args(%arg6 = %14) -> (vector<1x128xf32>)  : i32 {
      %73 = arith.addi %13, %arg5 : i32
      %74 = arith.index_cast %73 : i32 to index
      %75 = memref.load %arg2[%74] : memref<128xi32, #tpu.memory_space<smem>>
      %76 = arith.index_cast %75 : i32 to index
      %c0_39 = arith.constant 0 : index
      %77 = vector.load %arg3[%76, %c0_39] : memref<100x128xf32, #tpu.memory_space<vmem>>, vector<1x128xf32>
      %78 = arith.addf %arg6, %77 : vector<1x128xf32>
      scf.yield %78 : vector<1x128xf32>
    }
    %c1 = arith.constant 1 : index
    %c0_8 = arith.constant 0 : index
    %18 = vector.load %arg4[%c1, %c0_8] : memref<8x128xf32, #tpu.memory_space<vmem>>, vector<1x128xf32>
    tpu.vector_store %arg4[%c1, %c0_8], %17 {strides = array<i32>} : memref<8x128xf32, #tpu.memory_space<vmem>>, vector<1x128xf32>,
    %c2_i32 = arith.constant 2 : i32
    %19 = arith.addi %0, %c2_i32 : i32
    %20 = arith.index_cast %19 : i32 to index
    %21 = memref.load %arg1[%20] : memref<16xi32, #tpu.memory_space<smem>>
    %c8_i32_9 = arith.constant 8 : i32
    %22 = arith.muli %19, %c8_i32_9 : i32
    %cst_10 = arith.constant 0.000000e+00 : f32
    %23 = vector.broadcast %cst_10 : f32 to vector<1x128xf32>
    %c0_i32_11 = arith.constant 0 : i32
    %24 = arith.subi %21, %c0_i32_11 : i32
    %25 = arith.addi %c0_i32_11, %24 : i32
    %c1_i32_12 = arith.constant 1 : i32
    %26 = scf.for %arg5 = %c0_i32_11 to %25 step %c1_i32_12 iter_args(%arg6 = %23) -> (vector<1x128xf32>)  : i32 {
      %73 = arith.addi %22, %arg5 : i32
      %74 = arith.index_cast %73 : i32 to index
      %75 = memref.load %arg2[%74] : memref<128xi32, #tpu.memory_space<smem>>
      %76 = arith.index_cast %75 : i32 to index
      %c0_39 = arith.constant 0 : index
      %77 = vector.load %arg3[%76, %c0_39] : memref<100x128xf32, #tpu.memory_space<vmem>>, vector<1x128xf32>
      %78 = arith.addf %arg6, %77 : vector<1x128xf32>
      scf.yield %78 : vector<1x128xf32>
    }
    %c2 = arith.constant 2 : index
    %c0_13 = arith.constant 0 : index
    %27 = vector.load %arg4[%c2, %c0_13] : memref<8x128xf32, #tpu.memory_space<vmem>>, vector<1x128xf32>
    tpu.vector_store %arg4[%c2, %c0_13], %26 {strides = array<i32>} : memref<8x128xf32, #tpu.memory_space<vmem>>, vector<1x128xf32>,
    %c3_i32 = arith.constant 3 : i32
    %28 = arith.addi %0, %c3_i32 : i32
    %29 = arith.index_cast %28 : i32 to index
    %30 = memref.load %arg1[%29] : memref<16xi32, #tpu.memory_space<smem>>
    %c8_i32_14 = arith.constant 8 : i32
    %31 = arith.muli %28, %c8_i32_14 : i32
    %cst_15 = arith.constant 0.000000e+00 : f32
    %32 = vector.broadcast %cst_15 : f32 to vector<1x128xf32>
    %c0_i32_16 = arith.constant 0 : i32
    %33 = arith.subi %30, %c0_i32_16 : i32
    %34 = arith.addi %c0_i32_16, %33 : i32
    %c1_i32_17 = arith.constant 1 : i32
    %35 = scf.for %arg5 = %c0_i32_16 to %34 step %c1_i32_17 iter_args(%arg6 = %32) -> (vector<1x128xf32>)  : i32 {
      %73 = arith.addi %31, %arg5 : i32
      %74 = arith.index_cast %73 : i32 to index
      %75 = memref.load %arg2[%74] : memref<128xi32, #tpu.memory_space<smem>>
      %76 = arith.index_cast %75 : i32 to index
      %c0_39 = arith.constant 0 : index
      %77 = vector.load %arg3[%76, %c0_39] : memref<100x128xf32, #tpu.memory_space<vmem>>, vector<1x128xf32>
      %78 = arith.addf %arg6, %77 : vector<1x128xf32>
      scf.yield %78 : vector<1x128xf32>
    }
    %c3 = arith.constant 3 : index
    %c0_18 = arith.constant 0 : index
    %36 = vector.load %arg4[%c3, %c0_18] : memref<8x128xf32, #tpu.memory_space<vmem>>, vector<1x128xf32>
    tpu.vector_store %arg4[%c3, %c0_18], %35 {strides = array<i32>} : memref<8x128xf32, #tpu.memory_space<vmem>>, vector<1x128xf32>,
    %c4_i32 = arith.constant 4 : i32
    %37 = arith.addi %0, %c4_i32 : i32
    %38 = arith.index_cast %37 : i32 to index
    %39 = memref.load %arg1[%38] : memref<16xi32, #tpu.memory_space<smem>>
    %c8_i32_19 = arith.constant 8 : i32
    %40 = arith.muli %37, %c8_i32_19 : i32
    %cst_20 = arith.constant 0.000000e+00 : f32
    %41 = vector.broadcast %cst_20 : f32 to vector<1x128xf32>
    %c0_i32_21 = arith.constant 0 : i32
    %42 = arith.subi %39, %c0_i32_21 : i32
    %43 = arith.addi %c0_i32_21, %42 : i32
    %c1_i32_22 = arith.constant 1 : i32
    %44 = scf.for %arg5 = %c0_i32_21 to %43 step %c1_i32_22 iter_args(%arg6 = %41) -> (vector<1x128xf32>)  : i32 {
      %73 = arith.addi %40, %arg5 : i32
      %74 = arith.index_cast %73 : i32 to index
      %75 = memref.load %arg2[%74] : memref<128xi32, #tpu.memory_space<smem>>
      %76 = arith.index_cast %75 : i32 to index
      %c0_39 = arith.constant 0 : index
      %77 = vector.load %arg3[%76, %c0_39] : memref<100x128xf32, #tpu.memory_space<vmem>>, vector<1x128xf32>
      %78 = arith.addf %arg6, %77 : vector<1x128xf32>
      scf.yield %78 : vector<1x128xf32>
    }
    %c4 = arith.constant 4 : index
    %c0_23 = arith.constant 0 : index
    %45 = vector.load %arg4[%c4, %c0_23] : memref<8x128xf32, #tpu.memory_space<vmem>>, vector<1x128xf32>
    tpu.vector_store %arg4[%c4, %c0_23], %44 {strides = array<i32>} : memref<8x128xf32, #tpu.memory_space<vmem>>, vector<1x128xf32>,
    %c5_i32 = arith.constant 5 : i32
    %46 = arith.addi %0, %c5_i32 : i32
    %47 = arith.index_cast %46 : i32 to index
    %48 = memref.load %arg1[%47] : memref<16xi32, #tpu.memory_space<smem>>
    %c8_i32_24 = arith.constant 8 : i32
    %49 = arith.muli %46, %c8_i32_24 : i32
    %cst_25 = arith.constant 0.000000e+00 : f32
    %50 = vector.broadcast %cst_25 : f32 to vector<1x128xf32>
    %c0_i32_26 = arith.constant 0 : i32
    %51 = arith.subi %48, %c0_i32_26 : i32
    %52 = arith.addi %c0_i32_26, %51 : i32
    %c1_i32_27 = arith.constant 1 : i32
    %53 = scf.for %arg5 = %c0_i32_26 to %52 step %c1_i32_27 iter_args(%arg6 = %50) -> (vector<1x128xf32>)  : i32 {
      %73 = arith.addi %49, %arg5 : i32
      %74 = arith.index_cast %73 : i32 to index
      %75 = memref.load %arg2[%74] : memref<128xi32, #tpu.memory_space<smem>>
      %76 = arith.index_cast %75 : i32 to index
      %c0_39 = arith.constant 0 : index
      %77 = vector.load %arg3[%76, %c0_39] : memref<100x128xf32, #tpu.memory_space<vmem>>, vector<1x128xf32>
      %78 = arith.addf %arg6, %77 : vector<1x128xf32>
      scf.yield %78 : vector<1x128xf32>
    }
    %c5 = arith.constant 5 : index
    %c0_28 = arith.constant 0 : index
    %54 = vector.load %arg4[%c5, %c0_28] : memref<8x128xf32, #tpu.memory_space<vmem>>, vector<1x128xf32>
    tpu.vector_store %arg4[%c5, %c0_28], %53 {strides = array<i32>} : memref<8x128xf32, #tpu.memory_space<vmem>>, vector<1x128xf32>,
    %c6_i32 = arith.constant 6 : i32
    %55 = arith.addi %0, %c6_i32 : i32
    %56 = arith.index_cast %55 : i32 to index
    %57 = memref.load %arg1[%56] : memref<16xi32, #tpu.memory_space<smem>>
    %c8_i32_29 = arith.constant 8 : i32
    %58 = arith.muli %55, %c8_i32_29 : i32
    %cst_30 = arith.constant 0.000000e+00 : f32
    %59 = vector.broadcast %cst_30 : f32 to vector<1x128xf32>
    %c0_i32_31 = arith.constant 0 : i32
    %60 = arith.subi %57, %c0_i32_31 : i32
    %61 = arith.addi %c0_i32_31, %60 : i32
    %c1_i32_32 = arith.constant 1 : i32
    %62 = scf.for %arg5 = %c0_i32_31 to %61 step %c1_i32_32 iter_args(%arg6 = %59) -> (vector<1x128xf32>)  : i32 {
      %73 = arith.addi %58, %arg5 : i32
      %74 = arith.index_cast %73 : i32 to index
      %75 = memref.load %arg2[%74] : memref<128xi32, #tpu.memory_space<smem>>
      %76 = arith.index_cast %75 : i32 to index
      %c0_39 = arith.constant 0 : index
      %77 = vector.load %arg3[%76, %c0_39] : memref<100x128xf32, #tpu.memory_space<vmem>>, vector<1x128xf32>
      %78 = arith.addf %arg6, %77 : vector<1x128xf32>
      scf.yield %78 : vector<1x128xf32>
    }
    %c6 = arith.constant 6 : index
    %c0_33 = arith.constant 0 : index
    %63 = vector.load %arg4[%c6, %c0_33] : memref<8x128xf32, #tpu.memory_space<vmem>>, vector<1x128xf32>
    tpu.vector_store %arg4[%c6, %c0_33], %62 {strides = array<i32>} : memref<8x128xf32, #tpu.memory_space<vmem>>, vector<1x128xf32>,
    %c7_i32 = arith.constant 7 : i32
    %64 = arith.addi %0, %c7_i32 : i32
    %65 = arith.index_cast %64 : i32 to index
    %66 = memref.load %arg1[%65] : memref<16xi32, #tpu.memory_space<smem>>
    %c8_i32_34 = arith.constant 8 : i32
    %67 = arith.muli %64, %c8_i32_34 : i32
    %cst_35 = arith.constant 0.000000e+00 : f32
    %68 = vector.broadcast %cst_35 : f32 to vector<1x128xf32>
    %c0_i32_36 = arith.constant 0 : i32
    %69 = arith.subi %66, %c0_i32_36 : i32
    %70 = arith.addi %c0_i32_36, %69 : i32
    %c1_i32_37 = arith.constant 1 : i32
    %71 = scf.for %arg5 = %c0_i32_36 to %70 step %c1_i32_37 iter_args(%arg6 = %68) -> (vector<1x128xf32>)  : i32 {
      %73 = arith.addi %67, %arg5 : i32
      %74 = arith.index_cast %73 : i32 to index
      %75 = memref.load %arg2[%74] : memref<128xi32, #tpu.memory_space<smem>>
      %76 = arith.index_cast %75 : i32 to index
      %c0_39 = arith.constant 0 : index
      %77 = vector.load %arg3[%76, %c0_39] : memref<100x128xf32, #tpu.memory_space<vmem>>, vector<1x128xf32>
      %78 = arith.addf %arg6, %77 : vector<1x128xf32>
      scf.yield %78 : vector<1x128xf32>
    }
    %c7 = arith.constant 7 : index
    %c0_38 = arith.constant 0 : index
    %72 = vector.load %arg4[%c7, %c0_38] : memref<8x128xf32, #tpu.memory_space<vmem>>, vector<1x128xf32>
    tpu.vector_store %arg4[%c7, %c0_38], %71 {strides = array<i32>} : memref<8x128xf32, #tpu.memory_space<vmem>>, vector<1x128xf32>,
    return
  }
  func.func @transform_0(%arg0: i32, %arg1: memref<16xi32, #tpu.memory_space<smem>>, %arg2: memref<128xi32, #tpu.memory_space<smem>>) -> (i32, i32) {
    %c0_i32 = arith.constant 0 : i32
    %c0_i32_0 = arith.constant 0 : i32
    %c0_i32_1 = arith.constant 0 : i32
    return %c0_i32, %c0_i32_0 : i32, i32
  }
  func.func @transform_1(%arg0: i32, %arg1: memref<16xi32, #tpu.memory_space<smem>>, %arg2: memref<128xi32, #tpu.memory_space<smem>>) -> (i32, i32) {
    %c0_i32 = arith.constant 0 : i32
    %c0_i32_0 = arith.constant 0 : i32
    return %arg0, %c0_i32 : i32, i32
  }
}

</mosaic_0001>

<llo_original>
// kernel: tpu_custom_call.1
$region0: #{tpu_custom_call.1}
  #allocation0 [shape = 'u32[]', space=smem, size = 0x4, offset = 0x4, fixed_abs, tag = 'smem constant byte address 0x4 - core index']
  #allocation1 [shape = 'u32[144,128]{1,0:T(1,128)}', space=vmem, size = 0x12000, scoped, tag = 'internal scratch']
  #allocation2 [shape = 's32[1]{0}', space=sflag, size = 0x4, scoped, tag = 'scoped memory for tpu_custom_call.1']
  #allocation3 [shape = 'u8[512]{0}', space=smem, size = 0x200, scoped, tag = 'prefetched SMEM operand 0']
  #allocation4 [shape = 'u8[512]{0}', space=smem, size = 0x200, scoped, tag = 'prefetched SMEM operand 1']
  %s0 = inlined_call_operand.hbm [shape: s32[16], index: 0, kind: input, shape index: {}]
  %s1 = inlined_call_operand.vmem [shape: s32[128], index: 1, kind: input, shape index: {}]
  %s2 = inlined_call_operand.hbm [shape: f32[100,128], index: 2, kind: input, shape index: {}]
  %s3 = inlined_call_operand.hbm [shape: f32[16,128], index: 3, kind: output, shape index: {}]
  %s4 = sld [smem:[#allocation0]]
  $region97: #{tpu_custom_call.1} parent=0
    _
  %s6 = ssub.s32 1, %s4
  %s7 = scalar_select 0, %s6, %s4
  %9 = dma.hbm_to_smem %s0, 16, [#allocation3], [#allocation2]
  %s10 = sshll.u32 %s1, 4
  %s11 = int_to_ptr.vmem [resolvable:$true] %s10
  %13 = dma.vmem_to_smem %s11, 16, [#allocation4], [#allocation2]
  %14 = dma.done [#allocation2], 32
  %15 = sfence
  $region1: #{tpu_custom_call.1} parent=0
    #allocation5 [shape = 'u8[53248]{0}', space=vmem, size = 0xd000, scoped, tag = 'input window, operand 2, single buffered']
    #allocation6 [shape = 's32[2]{0}', space=sflag, size = 0x8, scoped, tag = 'scoped memory for tpu_custom_call.1']
    #allocation7 [shape = 's32[2]{0}', space=sflag, size = 0x8, scoped, tag = 'scoped memory for tpu_custom_call.1']
    #allocation8 [shape = 'u8[8192]{0}', space=vmem, size = 0x2000, scoped, tag = 'output window, operand 0']
    %16 = vsyncpa [#allocation6], 0
    %17 = vsyncpa [#allocation7], 0
    %s18 = scalar_lea.sflag [#allocation7], 1
    %19 = vsyncpa %s18, 0
    loop: start=0, step=1, limit=4
    $region2: #{tpu_custom_call.1} parent=1 // loop_pre_header
      _
    $region3: #{tpu_custom_call.1} parent=1 // loop_header
      %s21 = sphi 0, %s25
      %p22 = scmp.ge.s32.totalorder %s21, 4
      %s29 = sphi 0, %s29
      %s31 = sphi 0, %s29
      %s32 = sphi 0, %s31
      %s46 = sphi 0, %s32
      %s52 = sphi 0, %s54
      %s55 = sphi 0, %s52
      %s56 = sphi 0, %s55
      %s72 = sphi 0, %s56
    $region4: #{tpu_custom_call.1} parent=1 // loop_header_branch
      %24 = sbr.rel (%p22) target = $region8
    $region5: #{tpu_custom_call.1} parent=1 // loop_body
      %s26 = ssub.s32 %s21, 1
      %s27 = ssub.s32 %s21, 2
      %s28 = sadd.s32 %s21, 1
      %s30 = sadd.s32 %s29, 1
      %p33 = scmp.eq.s32.totalorder %s21, 1
      %p34 = scmp.ne.s32.totalorder %s29, %s31
      %p35 = scmp.eq.s32.totalorder %s21, 0
      %p36 = por %p34, %p35
      %p37 = scmp.ne.s32.totalorder %s29, %s31
      %p38 = scmp.eq.s32.totalorder %s26, 1
      %p39 = por %p37, %p38
      %p40 = scmp.ne.s32.totalorder %s31, %s32
      %p41 = scmp.eq.s32.totalorder %s26, 0
      %p42 = por %p40, %p41
      %p43 = scmp.ne.s32.totalorder %s31, %s32
      %p44 = scmp.eq.s32.totalorder %s27, 1
      %p45 = por %p43, %p44
      %p47 = scmp.ne.s32.totalorder %s32, %s46
      %p48 = scmp.eq.s32.totalorder %s27, 0
      %p49 = por %p47, %p48
      %s50 = ssub.s32 %s21, %s28
      %p51 = scmp.eq.s32.totalorder %s50, 0
      %s53 = sadd.s32 %s52, 1
      %s54 = scalar_select %p51, %s52, %s53
      %p57 = pneg %p51
      %p58 = scmp.eq.s32.totalorder %s21, 1
      %p59 = por %p57, %p58
      %p60 = scmp.ne.s32.totalorder %s52, %s55
      %p61 = scmp.eq.s32.totalorder %s21, 0
      %p62 = por %p60, %p61
      %p63 = scmp.ne.s32.totalorder %s52, %s55
      %p64 = scmp.eq.s32.totalorder %s26, 1
      %p65 = por %p63, %p64
      %p66 = scmp.ne.s32.totalorder %s55, %s56
      %p67 = scmp.eq.s32.totalorder %s26, 0
      %p68 = por %p66, %p67
      %p69 = scmp.ne.s32.totalorder %s55, %s56
      %p70 = scmp.eq.s32.totalorder %s27, 1
      %p71 = por %p69, %p70
      %p73 = scmp.ne.s32.totalorder %s56, %s72
      %p74 = scmp.eq.s32.totalorder %s27, 0
      %p75 = por %p73, %p74
      %p76 = scmp.le.s32.totalorder 1, %s21
      %p77 = scmp.lt.s32.totalorder %s21, 3
      %p78 = pnand %p76, %p77
      %p79 = pneg %p78
      // Predicated region
      $region9: #{tpu_custom_call.1} parent=5 // pred_check
        _
      $region10: #{tpu_custom_call.1} parent=5 // pred_check_branch
        %81 = sbr.rel (%p78) target = $region12
      $region11: #{tpu_custom_call.1} parent=5 // pred_region
        %s82 = ssub.s32 %s21, 1
        // Predicated region
        $region13: #{tpu_custom_call.1} parent=11 // pred_check
          %p83 = pneg %p42
        $region14: #{tpu_custom_call.1} parent=11 // pred_check_branch
          %85 = sbr.rel (%p83) target = $region16
        $region15: #{tpu_custom_call.1} parent=11 // pred_region
          %s87 = ssub.s32 1664, 1664
          %88 = vsyncadd [#allocation6], %s87
          %s89 = sshll.u32 [#allocation5], 4
          %s90 = int_to_ptr.vmem [resolvable:$true] %s89
          %95 = dma.hbm_to_vmem [thread:$0]  %s2, 1664, %s90, [#allocation6], 128, 128, 8
        $region16: #{tpu_custom_call.1} parent=11 // pred_fallthru
          _
      $region12: #{tpu_custom_call.1} parent=5 // pred_fallthru
        _
      %p96 = scmp.lt.s32.totalorder %s21, 2
      // Predicated region
      $region17: #{tpu_custom_call.1} parent=5 // pred_check
        %p97 = pneg %p96
      $region18: #{tpu_custom_call.1} parent=5 // pred_check_branch
        %99 = sbr.rel (%p97) target = $region20
      $region19: #{tpu_custom_call.1} parent=5 // pred_region
        _
      $region20: #{tpu_custom_call.1} parent=5 // pred_fallthru
        _
      %p100 = scmp.le.s32.totalorder 1, %s21
      %p101 = scmp.lt.s32.totalorder %s21, 3
      %p102 = pnand %p100, %p101
      %p103 = pneg %p102
      // Predicated region
      $region21: #{tpu_custom_call.1} parent=5 // pred_check
        _
      $region22: #{tpu_custom_call.1} parent=5 // pred_check_branch
        %105 = sbr.rel (%p102) target = $region24
      $region23: #{tpu_custom_call.1} parent=5 // pred_region
        %s106 = ssub.s32 %s21, 1
        // Predicated region
        $region25: #{tpu_custom_call.1} parent=23 // pred_check
          %p107 = pneg %p42
        $region26: #{tpu_custom_call.1} parent=23 // pred_check_branch
          %109 = sbr.rel (%p107) target = $region28
        $region27: #{tpu_custom_call.1} parent=23 // pred_region
          %110 = dma.done [#allocation6], 1664
        $region28: #{tpu_custom_call.1} parent=23 // pred_fallthru
          _
        %p111 = pneg %p42
        %p112 = pneg %p39
        %p113 = pneg %p68
        %p114 = pneg %p65
        %s115 = sand.u32 %s55, 1
        %s116 = scalar_lea.sflag [#allocation7], %s115
        %s117 = sand.u32 %s55, 1
        %s118 = smul.addr %s117, 8
        %s119 = scalar_lea.vmem [#allocation8], %s118
        %s120 = smul.u32 %s26, 8
        %s121 = sld [smem:[#allocation3 + %s120]]
        %s122 = smul.u32 %s26, 64
        // While loop
        $region29: #{tpu_custom_call.1} parent=23 // loop_pre_header
          _
        $region30: #{tpu_custom_call.1} parent=23 // loop_header
          %s124 = sphi 0, %s126
          %p125 = scmp.ge.s32.totalorder %s124, %s121
          %v129 = vphi 0.0, %v134
        $region31: #{tpu_custom_call.1} parent=23 // loop_header_branch
          %128 = sbr.rel (%p125) target = $region35
        $region32: #{tpu_custom_call.1} parent=23 // loop_body
          %s130 = sadd.s32 %s122, %s124
          %s131 = sld [smem:[#allocation4 + %s130]]
          %s132 = scalar_lea.vmem [#allocation5], %s131
          %v133 = vld [vmem:[%s132] sm:$0x1]
          %v134 = vadd.f32 %v129, %v133
        $region33: #{tpu_custom_call.1} parent=23 // loop_footer
          %s126 = sadd.s32 %s124, 1
        $region34: #{tpu_custom_call.1} parent=23 // loop_footer_branch
          %123 = sbr.rel target = $region30
        $region35: #{tpu_custom_call.1} parent=23 // loop_exit
          _
        %135 = vst [vmem:[%s119] sm:$0x1] %v129
        %s136 = sadd.s32 %s120, 1
        %s137 = sld [smem:[#allocation3 + %s136]]
        %s138 = smul.u32 %s136, 8
        // While loop
        $region36: #{tpu_custom_call.1} parent=23 // loop_pre_header
          _
        $region37: #{tpu_custom_call.1} parent=23 // loop_header
          %s140 = sphi 0, %s142
          %p141 = scmp.ge.s32.totalorder %s140, %s137
          %v145 = vphi 0.0, %v150
        $region38: #{tpu_custom_call.1} parent=23 // loop_header_branch
          %144 = sbr.rel (%p141) target = $region42
        $region39: #{tpu_custom_call.1} parent=23 // loop_body
          %s146 = sadd.s32 %s138, %s140
          %s147 = sld [smem:[#allocation4 + %s146]]
          %s148 = scalar_lea.vmem [#allocation5], %s147
          %v149 = vld [vmem:[%s148] sm:$0x1]
          %v150 = vadd.f32 %v145, %v149
        $region40: #{tpu_custom_call.1} parent=23 // loop_footer
          %s142 = sadd.s32 %s140, 1
        $region41: #{tpu_custom_call.1} parent=23 // loop_footer_branch
          %139 = sbr.rel target = $region37
        $region42: #{tpu_custom_call.1} parent=23 // loop_exit
          _
        %151 = vst [vmem:[%s119 + $0x1] sm:$0x1] %v145
        %s152 = sadd.s32 %s120, 2
        %s153 = sld [smem:[#allocation3 + %s152]]
        %s154 = smul.u32 %s152, 8
        // While loop
        $region43: #{tpu_custom_call.1} parent=23 // loop_pre_header
          _
        $region44: #{tpu_custom_call.1} parent=23 // loop_header
          %s156 = sphi 0, %s158
          %p157 = scmp.ge.s32.totalorder %s156, %s153
          %v161 = vphi 0.0, %v166
        $region45: #{tpu_custom_call.1} parent=23 // loop_header_branch
          %160 = sbr.rel (%p157) target = $region49
        $region46: #{tpu_custom_call.1} parent=23 // loop_body
          %s162 = sadd.s32 %s154, %s156
          %s163 = sld [smem:[#allocation4 + %s162]]
          %s164 = scalar_lea.vmem [#allocation5], %s163
          %v165 = vld [vmem:[%s164] sm:$0x1]
          %v166 = vadd.f32 %v161, %v165
        $region47: #{tpu_custom_call.1} parent=23 // loop_footer
          %s158 = sadd.s32 %s156, 1
        $region48: #{tpu_custom_call.1} parent=23 // loop_footer_branch
          %155 = sbr.rel target = $region44
        $region49: #{tpu_custom_call.1} parent=23 // loop_exit
          _
        %167 = vst [vmem:[%s119 + $0x2] sm:$0x1] %v161
        %s168 = sadd.s32 %s120, 3
        %s169 = sld [smem:[#allocation3 + %s168]]
        %s170 = smul.u32 %s168, 8
        // While loop
        $region50: #{tpu_custom_call.1} parent=23 // loop_pre_header
          _
        $region51: #{tpu_custom_call.1} parent=23 // loop_header
          %s172 = sphi 0, %s174
          %p173 = scmp.ge.s32.totalorder %s172, %s169
          %v177 = vphi 0.0, %v182
        $region52: #{tpu_custom_call.1} parent=23 // loop_header_branch
          %176 = sbr.rel (%p173) target = $region56
        $region53: #{tpu_custom_call.1} parent=23 // loop_body
          %s178 = sadd.s32 %s170, %s172
          %s179 = sld [smem:[#allocation4 + %s178]]
          %s180 = scalar_lea.vmem [#allocation5], %s179
          %v181 = vld [vmem:[%s180] sm:$0x1]
          %v182 = vadd.f32 %v177, %v181
        $region54: #{tpu_custom_call.1} parent=23 // loop_footer
          %s174 = sadd.s32 %s172, 1
        $region55: #{tpu_custom_call.1} parent=23 // loop_footer_branch
          %171 = sbr.rel target = $region51
        $region56: #{tpu_custom_call.1} parent=23 // loop_exit
          _
        %183 = vst [vmem:[%s119 + $0x3] sm:$0x1] %v177
        %s184 = sadd.s32 %s120, 4
        %s185 = sld [smem:[#allocation3 + %s184]]
        %s186 = smul.u32 %s184, 8
        // While loop
        $region57: #{tpu_custom_call.1} parent=23 // loop_pre_header
          _
        $region58: #{tpu_custom_call.1} parent=23 // loop_header
          %s188 = sphi 0, %s190
          %p189 = scmp.ge.s32.totalorder %s188, %s185
          %v193 = vphi 0.0, %v198
        $region59: #{tpu_custom_call.1} parent=23 // loop_header_branch
          %192 = sbr.rel (%p189) target = $region63
        $region60: #{tpu_custom_call.1} parent=23 // loop_body
          %s194 = sadd.s32 %s186, %s188
          %s195 = sld [smem:[#allocation4 + %s194]]
          %s196 = scalar_lea.vmem [#allocation5], %s195
          %v197 = vld [vmem:[%s196] sm:$0x1]
          %v198 = vadd.f32 %v193, %v197
        $region61: #{tpu_custom_call.1} parent=23 // loop_footer
          %s190 = sadd.s32 %s188, 1
        $region62: #{tpu_custom_call.1} parent=23 // loop_footer_branch
          %187 = sbr.rel target = $region58
        $region63: #{tpu_custom_call.1} parent=23 // loop_exit
          _
        %199 = vst [vmem:[%s119 + $0x4] sm:$0x1] %v193
        %s200 = sadd.s32 %s120, 5
        %s201 = sld [smem:[#allocation3 + %s200]]
        %s202 = smul.u32 %s200, 8
        // While loop
        $region64: #{tpu_custom_call.1} parent=23 // loop_pre_header
          _
        $region65: #{tpu_custom_call.1} parent=23 // loop_header
          %s204 = sphi 0, %s206
          %p205 = scmp.ge.s32.totalorder %s204, %s201
          %v209 = vphi 0.0, %v214
        $region66: #{tpu_custom_call.1} parent=23 // loop_header_branch
          %208 = sbr.rel (%p205) target = $region70
        $region67: #{tpu_custom_call.1} parent=23 // loop_body
          %s210 = sadd.s32 %s202, %s204
          %s211 = sld [smem:[#allocation4 + %s210]]
          %s212 = scalar_lea.vmem [#allocation5], %s211
          %v213 = vld [vmem:[%s212] sm:$0x1]
          %v214 = vadd.f32 %v209, %v213
        $region68: #{tpu_custom_call.1} parent=23 // loop_footer
          %s206 = sadd.s32 %s204, 1
        $region69: #{tpu_custom_call.1} parent=23 // loop_footer_branch
          %203 = sbr.rel target = $region65
        $region70: #{tpu_custom_call.1} parent=23 // loop_exit
          _
        %215 = vst [vmem:[%s119 + $0x5] sm:$0x1] %v209
        %s216 = sadd.s32 %s120, 6
        %s217 = sld [smem:[#allocation3 + %s216]]
        %s218 = smul.u32 %s216, 8
        // While loop
        $region71: #{tpu_custom_call.1} parent=23 // loop_pre_header
          _
        $region72: #{tpu_custom_call.1} parent=23 // loop_header
          %s220 = sphi 0, %s222
          %p221 = scmp.ge.s32.totalorder %s220, %s217
          %v225 = vphi 0.0, %v230
        $region73: #{tpu_custom_call.1} parent=23 // loop_header_branch
          %224 = sbr.rel (%p221) target = $region77
        $region74: #{tpu_custom_call.1} parent=23 // loop_body
          %s226 = sadd.s32 %s218, %s220
          %s227 = sld [smem:[#allocation4 + %s226]]
          %s228 = scalar_lea.vmem [#allocation5], %s227
          %v229 = vld [vmem:[%s228] sm:$0x1]
          %v230 = vadd.f32 %v225, %v229
        $region75: #{tpu_custom_call.1} parent=23 // loop_footer
          %s222 = sadd.s32 %s220, 1
        $region76: #{tpu_custom_call.1} parent=23 // loop_footer_branch
          %219 = sbr.rel target = $region72
        $region77: #{tpu_custom_call.1} parent=23 // loop_exit
          _
        %231 = vst [vmem:[%s119 + $0x6] sm:$0x1] %v225
        %s232 = sadd.s32 %s120, 7
        %s233 = sld [smem:[#allocation3 + %s232]]
        %s234 = smul.u32 %s232, 8
        // While loop
        $region78: #{tpu_custom_call.1} parent=23 // loop_pre_header
          _
        $region79: #{tpu_custom_call.1} parent=23 // loop_header
          %s236 = sphi 0, %s238
          %p237 = scmp.ge.s32.totalorder %s236, %s233
          %v241 = vphi 0.0, %v246
        $region80: #{tpu_custom_call.1} parent=23 // loop_header_branch
          %240 = sbr.rel (%p237) target = $region84
        $region81: #{tpu_custom_call.1} parent=23 // loop_body
          %s242 = sadd.s32 %s234, %s236
          %s243 = sld [smem:[#allocation4 + %s242]]
          %s244 = scalar_lea.vmem [#allocation5], %s243
          %v245 = vld [vmem:[%s244] sm:$0x1]
          %v246 = vadd.f32 %v241, %v245
        $region82: #{tpu_custom_call.1} parent=23 // loop_footer
          %s238 = sadd.s32 %s236, 1
        $region83: #{tpu_custom_call.1} parent=23 // loop_footer_branch
          %235 = sbr.rel target = $region79
        $region84: #{tpu_custom_call.1} parent=23 // loop_exit
          _
        %247 = vst [vmem:[%s119 + $0x7] sm:$0x1] %v241
        %s248 = sand.u32 %s55, 1
        %s249 = scalar_lea.sflag [#allocation7], %s248
        %s250 = sand.u32 %s55, 1
        %s251 = smul.addr %s250, 8
        %s252 = scalar_lea.vmem [#allocation8], %s251
        // Predicated region
        $region85: #{tpu_custom_call.1} parent=23 // pred_check
          %p253 = pneg %p65
        $region86: #{tpu_custom_call.1} parent=23 // pred_check_branch
          %255 = sbr.rel (%p253) target = $region88
        $region87: #{tpu_custom_call.1} parent=23 // pred_region
          %s257 = ssub.s32 128, 128
          %258 = vsyncadd %s249, %s257
          %s259 = smul.addr %s26, 128
          %s260 = scalar_lea.hbm %s3, %s259
          %s262 = sshll.u32 %s252, 4
          %s263 = int_to_ptr.vmem [resolvable:$true] %s262
          %265 = dma.vmem_to_hbm [thread:$0]  %s263, 128, %s260, %s249
        $region88: #{tpu_custom_call.1} parent=23 // pred_fallthru
          _
      $region24: #{tpu_custom_call.1} parent=5 // pred_fallthru
        _
      %p266 = scmp.le.s32.totalorder 2, %s21
      // Predicated region
      $region89: #{tpu_custom_call.1} parent=5 // pred_check
        %p267 = pneg %p266
      $region90: #{tpu_custom_call.1} parent=5 // pred_check_branch
        %269 = sbr.rel (%p267) target = $region92
      $region91: #{tpu_custom_call.1} parent=5 // pred_region
        %s270 = ssub.s32 %s21, 2
        // Predicated region
        $region93: #{tpu_custom_call.1} parent=91 // pred_check
          %p271 = pneg %p71
        $region94: #{tpu_custom_call.1} parent=91 // pred_check_branch
          %273 = sbr.rel (%p271) target = $region96
        $region95: #{tpu_custom_call.1} parent=91 // pred_region
          %s274 = sand.u32 %s56, 1
          %s275 = scalar_lea.sflag [#allocation7], %s274
          %s276 = sand.u32 %s56, 1
          %s277 = smul.addr %s276, 8
          %s278 = scalar_lea.vmem [#allocation8], %s277
          %279 = dma.done %s275, 128
        $region96: #{tpu_custom_call.1} parent=91 // pred_fallthru
          _
      $region92: #{tpu_custom_call.1} parent=5 // pred_fallthru
        _
    $region6: #{tpu_custom_call.1} parent=1 // loop_footer
      %s25 = sadd.s32 1, %s21
    $region7: #{tpu_custom_call.1} parent=1 // loop_footer_branch
      %20 = sbr.rel target = $region3
    $region8: #{tpu_custom_call.1} parent=1 // loop_exit
      _
    %280 = vsyncpa [#allocation6], 1
    %s281 = scalar_lea.sflag [#allocation6], 1
    %282 = vsyncpa %s281, 1
    %283 = vsyncpa [#allocation7], 1
    %s284 = scalar_lea.sflag [#allocation7], 1
    %285 = vsyncpa %s284, 1

</llo_original>
